<compile_context>
chip_gen: v5e
topology: v5e:2x2
jax: 0.10.0
libtpu: 0.0.40
codegen_flags: <defaults>
</compile_context>

<pallas_src>
import math

import jax
import jax.numpy as jnp
from jax.experimental import pallas as pl
from jax.experimental.pallas import tpu as pltpu


_INV_SQRT2 = 0.7071067811865476
_MIB = 1024 * 1024


def _erf_approx(x):
    # Abramowitz & Stegun 7.1.26 rational approximation, |err| <= ~1.5e-7 (f32).
    # Elementwise only: VPU mul/add + EUP exp + EUP approximate reciprocal, so it
    # lowers cleanly in Mosaic and keeps the 4-wide VALU slot light.
    a1, a2, a3, a4, a5 = (0.254829592, -0.284496736, 1.421413741,
                          -1.453152027, 1.061405429)
    p = 0.3275911
    z = jnp.abs(x)
    t = pl.reciprocal(1.0 + p * z, approx=True)          # EUP slot (nearly free)
    poly = ((((a5 * t + a4) * t + a3) * t + a2) * t + a1) * t
    e = 1.0 - poly * jnp.exp(-z * z)                      # EUP exp
    return jnp.where(x >= 0.0, e, -e)


def _gelu_exact(x):
    # Matches PyTorch's default nn.GELU() (erf-based) to ~1e-6.
    return 0.5 * x * (1.0 + _erf_approx(x * _INV_SQRT2))


# --------------------------------------------------------------------------- #
# Kernels
# --------------------------------------------------------------------------- #
def _ffn_resident_kernel(x_ref, w1_ref, b1_ref, w2_ref, b2_ref, o_ref):
    # One row tile per grid step; full W1/W2 have constant index_maps, so they
    # stay VMEM-resident and are DMA'd from HBM only once.
    h = jnp.dot(x_ref[...], w1_ref[...], preferred_element_type=jnp.float32)
    h = _gelu_exact(h + b1_ref[...])            # f32 bias + GELU on VPU/EUP
    # TODO(synk): nn.Dropout (after GELU and after the 2nd Linear) is identity
    # here (eval mode / p = 0).
    y = jnp.dot(h.astype(w2_ref.dtype), w2_ref[...],
                preferred_element_type=jnp.float32)
    o_ref[...] = (y + b2_ref[...]).astype(o_ref.dtype)


def _ffn_tiled_kernel(x_ref, w1_ref, b1_ref, w2_ref, b2_ref, o_ref, acc_ref):
    # Fallback when W1/W2 do not fit in VMEM: ffwd dim is an "arbitrary"
    # reduction grid axis with an f32 accumulator.
    j = pl.program_id(1)

    @pl.when(j == 0)
    def _init():
        acc_ref[...] = jnp.zeros_like(acc_ref)

    h = jnp.dot(x_ref[...], w1_ref[...], preferred_element_type=jnp.float32)
    h = _gelu_exact(h + b1_ref[...])
    acc_ref[...] += jnp.dot(h.astype(w2_ref.dtype), w2_ref[...],
                            preferred_element_type=jnp.float32)

    @pl.when(j == pl.num_programs(1) - 1)
    def _finalize():
        o_ref[...] = (acc_ref[...] + b2_ref[...]).astype(o_ref.dtype)


# --------------------------------------------------------------------------- #
# Tiling / budgeting helpers
# --------------------------------------------------------------------------- #
def _round_up(n, m):
    return ((n + m - 1) // m) * m


def _sublane_multiple(dtype):
    # 8 for f32, 16 for bf16, 32 for 8-bit (packed sublanes).
    return max(8, 32 // jnp.dtype(dtype).itemsize)


def _vmem_budget_bytes():
    try:
        phys = int(pltpu.get_tpu_info().vmem_capacity_bytes)
    except Exception:
        phys = 64 * _MIB            # conservative: v7x per-TensorCore VMEM
    # Leave headroom for Mosaic internal scratch / semaphores.
    return max(32 * _MIB, phys - 12 * _MIB)


def _resident_vmem_bytes(tm, d, f, xb, wb, ob):
    weights = 2 * 2 * d * f * wb                 # W1 + W2 (double-buffered alloc)
    io = 2 * tm * d * (xb + ob)                  # x / out tiles, double-buffered
    hidden = tm * f * (4 + wb)                   # f32 hidden + cast copy
    bias = 4 * (f + d)
    return weights + io + hidden + bias


def _tiled_vmem_bytes(tm, d, tf, xb, wb, ob):
    weights = 2 * 2 * d * tf * wb
    io = 2 * tm * d * (xb + ob)
    hidden = tm * tf * (4 + wb)
    acc = tm * d * 4
    bias = 4 * (tf + d)
    return weights + io + hidden + acc + bias


def _choose_row_tile(m, block_m, sub):
    tm = min(_round_up(block_m, sub), _round_up(m, sub))
    if _round_up(m, tm) // tm < 2 and m > sub:
        # Guarantee >= 2 row tiles so both v7x TensorCores get work on the
        # "parallel" axis (harmless on single-core v5e/v6e).
        tm = _round_up(-(-m // 2), sub)
    return tm


def _pick_ffwd_tile(f):
    # Keep the ffwd tile >= 512 for DMA efficiency on lane-sliced W1, but
    # bounded so a huge non-divisible F can never blow the VMEM budget.
    for cand in (1024, 512):
        if f >= cand:
            return cand
    return _round_up(f, 128)


# --------------------------------------------------------------------------- #
# Wrapper
# --------------------------------------------------------------------------- #
def feedforward_pallas(x, w1, b1, w2, b2, *, block_m=512,
                       cast_to_bf16=False, force_tiled=False):
    """FeedForward forward: GELU(x @ W1 + b1) @ W2 + b2 (dropout == identity).

    x: (..., D); w1: (D, F); b1: (F,) or (1, F); w2: (F, D); b2: (D,) or (1, D).
    Weights are stored (in_features, out_features), i.e. W_jax = W_torch.T.

    cast_to_bf16=True runs both matmuls in bf16 (f32 accumulation, f32 bias and
    GELU) — recommended for production sizes on v6e/v7x (MXU peak, half the
    weight DMA bytes).  The f32 path is kept for bit-accuracy checks.
    """
    *lead, d_model = x.shape
    ffwd_dim = w1.shape[1]
    out_dtype = x.dtype

    b1 = jnp.asarray(b1).reshape(1, -1).astype(jnp.float32)
    b2 = jnp.asarray(b2).reshape(1, -1).astype(jnp.float32)

    xm = x.reshape(-1, d_model)
    if cast_to_bf16:
        xm = xm.astype(jnp.bfloat16)
        w1 = w1.astype(jnp.bfloat16)
        w2 = w2.astype(jnp.bfloat16)

    m = xm.shape[0]
    xb = jnp.dtype(xm.dtype).itemsize
    wb = jnp.dtype(w1.dtype).itemsize
    ob = jnp.dtype(out_dtype).itemsize
    sub = _sublane_multiple(xm.dtype)
    budget = _vmem_budget_bytes()

    cost = pl.CostEstimate(
        flops=int(4 * m * d_model * ffwd_dim),
        transcendentals=int(m * ffwd_dim),
        bytes_accessed=int(m * d_model * (xb + ob)
                           + 2 * d_model * ffwd_dim * wb
                           + 4 * (ffwd_dim + d_model)),
    )

    # Decide path + tiles before padding anything.
    tm = _choose_row_tile(m, block_m, sub)
    use_resident = not force_tiled
    if use_resident:
        while (_resident_vmem_bytes(tm, d_model, ffwd_dim, xb, wb, ob) > budget
               and tm > sub):
            tm = max(sub, _round_up(tm // 2, sub))
        if _resident_vmem_bytes(tm, d_model, ffwd_dim, xb, wb, ob) > budget:
            use_resident = False

    tf = None
    f_pad = ffwd_dim
    if not use_resident:
        tf = _pick_ffwd_tile(ffwd_dim)
        f_pad = _round_up(ffwd_dim, tf)
        tm = _choose_row_tile(m, block_m, sub)
        while (_tiled_vmem_bytes(tm, d_model, tf, xb, wb, ob) > budget
               and tm > sub):
            tm = max(sub, _round_up(tm // 2, sub))

    m_pad = _round_up(m, tm)
    if m_pad != m:
        xm = jnp.pad(xm, ((0, m_pad - m), (0, 0)))

    if use_resident:
        out = pl.pallas_call(
            _ffn_resident_kernel,
            out_shape=jax.ShapeDtypeStruct((m_pad, d_model), out_dtype),
            grid_spec=pltpu.PrefetchScalarGridSpec(
                num_scalar_prefetch=0,
                grid=(m_pad // tm,),
                in_specs=[
                    pl.BlockSpec((tm, d_model), lambda i: (i, 0)),        # x tile
                    pl.BlockSpec((d_model, ffwd_dim), lambda i: (0, 0)),  # W1 resident
                    pl.BlockSpec((1, ffwd_dim), lambda i: (0, 0)),        # b1
                    pl.BlockSpec((ffwd_dim, d_model), lambda i: (0, 0)),  # W2 resident
                    pl.BlockSpec((1, d_model), lambda i: (0, 0)),         # b2
                ],
                out_specs=pl.BlockSpec((tm, d_model), lambda i: (i, 0)),
            ),
            compiler_params=pltpu.CompilerParams(
                dimension_semantics=("parallel",),
                vmem_limit_bytes=budget,
            ),
            cost_estimate=cost,
        )(xm, w1, b1, w2, b2)
    else:
        if f_pad != ffwd_dim:
            # Zero-padded ffwd columns/rows contribute exactly 0 (gelu(0) == 0).
            w1 = jnp.pad(w1, ((0, 0), (0, f_pad - ffwd_dim)))
            b1 = jnp.pad(b1, ((0, 0), (0, f_pad - ffwd_dim)))
            w2 = jnp.pad(w2, ((0, f_pad - ffwd_dim), (0, 0)))

        out = pl.pallas_call(
            _ffn_tiled_kernel,
            out_shape=jax.ShapeDtypeStruct((m_pad, d_model), out_dtype),
            grid_spec=pltpu.PrefetchScalarGridSpec(
                num_scalar_prefetch=0,
                grid=(m_pad // tm, f_pad // tf),
                in_specs=[
                    pl.BlockSpec((tm, d_model), lambda i, j: (i, 0)),
                    pl.BlockSpec((d_model, tf), lambda i, j: (0, j)),
                    pl.BlockSpec((1, tf), lambda i, j: (0, j)),
                    pl.BlockSpec((tf, d_model), lambda i, j: (j, 0)),
                    pl.BlockSpec((1, d_model), lambda i, j: (0, 0)),
                ],
                out_specs=pl.BlockSpec((tm, d_model), lambda i, j: (i, 0)),
                scratch_shapes=[pltpu.VMEM((tm, d_model), jnp.float32)],
            ),
            compiler_params=pltpu.CompilerParams(
                dimension_semantics=("parallel", "arbitrary"),
                vmem_limit_bytes=budget,
            ),
            cost_estimate=cost,
        )(xm, w1, b1, w2, b2)

    if m_pad != m:
        out = out[:m]
    return out.reshape(*lead, d_model)


def feedforward_ref(x, w1, b1, w2, b2):
    """Pure-JAX reference mirroring the PyTorch forward (eval mode), f32 math."""
    xf = x.astype(jnp.float32)
    h = jnp.dot(xf, w1.astype(jnp.float32),
                precision=jax.lax.Precision.HIGHEST) + b1.astype(jnp.float32).reshape(1, -1)
    h = jax.nn.gelu(h, approximate=False)      # exact erf GELU == nn.GELU()
    y = jnp.dot(h, w2.astype(jnp.float32),
                precision=jax.lax.Precision.HIGHEST) + b2.astype(jnp.float32).reshape(1, -1)
    return y


if __name__ == "__main__":
    # Small, deterministic config consistent with the module's __init__.
    B, N = 2, 8
    d_model = 32
    ffwd_dim = 128

    key = jax.random.PRNGKey(0)
    kx, k1, kb1, k2, kb2 = jax.random.split(key, 5)
    x = jax.random.normal(kx, (B, N, d_model), dtype=jnp.float32)
    # nn.Linear-style init (uniform in +/- 1/sqrt(fan_in)), stored as (in, out).
    lim1 = 1.0 / math.sqrt(d_model)
    w1 = jax.random.uniform(k1, (d_model, ffwd_dim), jnp.float32, -lim1, lim1)
    b1 = jax.random.uniform(kb1, (1, ffwd_dim), jnp.float32, -lim1, lim1)
    lim2 = 1.0 / math.sqrt(ffwd_dim)
    w2 = jax.random.uniform(k2, (ffwd_dim, d_model), jnp.float32, -lim2, lim2)
    b2 = jax.random.uniform(kb2, (1, d_model), jnp.float32, -lim2, lim2)

    y_ref = feedforward_ref(x, w1, b1, w2, b2)

    # 1) f32, weights-resident primary path.
    y = jax.block_until_ready(feedforward_pallas(x, w1, b1, w2, b2))
    assert y.shape == (B, N, d_model)
    assert jnp.allclose(y, y_ref, atol=1e-2, rtol=1e-2), "f32 mismatch vs reference"

    # 2) bf16 inputs (MXU fast path); compared against the f32 reference.
    xb_, w1b, b1b, w2b, b2b = (t.astype(jnp.bfloat16) for t in (x, w1, b1, w2, b2))
    yb = jax.block_until_ready(feedforward_pallas(xb_, w1b, b1b, w2b, b2b))
    assert yb.shape == (B, N, d_model)
    assert jnp.allclose(yb.astype(jnp.float32), y_ref, atol=5e-2, rtol=5e-2), \
        "bf16 mismatch vs reference"

    # 3) f32 inputs with in-wrapper bf16 matmul cast (recommended production mode).
    yc = jax.block_until_ready(
        feedforward_pallas(x, w1, b1, w2, b2, cast_to_bf16=True))
    assert jnp.allclose(yc, y_ref, atol=5e-2, rtol=5e-2), \
        "cast_to_bf16 mismatch vs reference"

    # 4) Fallback path (ffwd axis tiled + f32 accumulator), non-128-divisible F,
    #    exercising the zero-padded ffwd columns and multi-step accumulation.
    ffwd2 = 1152
    k3, kb3, k4, kb4 = jax.random.split(jax.random.PRNGKey(1), 4)
    w1c = jax.random.uniform(k3, (d_model, ffwd2), jnp.float32, -lim1, lim1)
    b1c = jax.random.uniform(kb3, (1, ffwd2), jnp.float32, -lim1, lim1)
    lim2c = 1.0 / math.sqrt(ffwd2)
    w2c = jax.random.uniform(k4, (ffwd2, d_model), jnp.float32, -lim2c, lim2c)
    b2c = jax.random.uniform(kb4, (1, d_model), jnp.float32, -lim2c, lim2c)
    yt = jax.block_until_ready(
        feedforward_pallas(x, w1c, b1c, w2c, b2c, force_tiled=True))
    yt_ref = feedforward_ref(x, w1c, b1c, w2c, b2c)
    assert jnp.allclose(yt, yt_ref, atol=1e-2, rtol=1e-2), \
        "tiled-fallback mismatch vs reference"

    print("KERNEL_OK")
</pallas_src>

<mosaic_0001>
module attributes {stable_mosaic.version = 11 : i64} {
  func.func @_ffn_resident_kernel(%arg0: i32, %arg1: memref<8x32xf32, #tpu.memory_space<vmem>>, %arg2: memref<32x128xf32, #tpu.memory_space<vmem>>, %arg3: memref<1x128xf32, #tpu.memory_space<vmem>>, %arg4: memref<128x32xf32, #tpu.memory_space<vmem>>, %arg5: memref<1x32xf32, #tpu.memory_space<vmem>>, %arg6: memref<8x32xf32, #tpu.memory_space<vmem>>) attributes {dimension_semantics = [#tpu.dimension_semantics<parallel>], iteration_bounds = array<i64: 2>, scalar_prefetch = 0 : i64, scratch_operands = 0 : i64, tpu.core_type = #tpu.core_type<tc>, window_params = [{transform_indices = @transform_0, window_bounds = array<i64: 8, 32>}, {pipeline_mode = #tpu.pipeline_mode<synchronous>, transform_indices = @transform_1, window_bounds = array<i64: 32, 128>}, {pipeline_mode = #tpu.pipeline_mode<synchronous>, transform_indices = @transform_2, window_bounds = array<i64: 1, 128>}, {pipeline_mode = #tpu.pipeline_mode<synchronous>, transform_indices = @transform_3, window_bounds = array<i64: 128, 32>}, {pipeline_mode = #tpu.pipeline_mode<synchronous>, transform_indices = @transform_4, window_bounds = array<i64: 1, 32>}, {transform_indices = @transform_5, window_bounds = array<i64: 8, 32>}]} {
    %c0 = arith.constant 0 : index
    %c0_0 = arith.constant 0 : index
    %0 = vector.load %arg1[%c0, %c0_0] : memref<8x32xf32, #tpu.memory_space<vmem>>, vector<8x32xf32>
    %c0_1 = arith.constant 0 : index
    %c0_2 = arith.constant 0 : index
    %1 = vector.load %arg2[%c0_1, %c0_2] : memref<32x128xf32, #tpu.memory_space<vmem>>, vector<32x128xf32>
    %cst = arith.constant dense<0.000000e+00> : vector<8x128xf32>
    %2 = tpu.matmul %0, %1, %cst {dimension_numbers = #tpu.dot_dimension_numbers<[1], [0], [0], [1], [0, 0, 1, 1], [], []>} : vector<8x32xf32>, vector<32x128xf32>, vector<8x128xf32> -> vector<8x128xf32>
    %c0_3 = arith.constant 0 : index
    %c0_4 = arith.constant 0 : index
    %3 = vector.load %arg3[%c0_3, %c0_4] : memref<1x128xf32, #tpu.memory_space<vmem>>, vector<1x128xf32>
    %4 = vector.broadcast %3 : vector<1x128xf32> to vector<8x128xf32>
    %5 = arith.addf %2, %4 : vector<8x128xf32>
    %cst_5 = arith.constant 5.000000e-01 : f32
    %6 = vector.broadcast %cst_5 : f32 to vector<8x128xf32>
    %7 = arith.mulf %6, %5 : vector<8x128xf32>
    %cst_6 = arith.constant 0.707106769 : f32
    %8 = vector.broadcast %cst_6 : f32 to vector<8x128xf32>
    %9 = arith.mulf %5, %8 : vector<8x128xf32>
    %10 = math.absf %9 : vector<8x128xf32>
    %cst_7 = arith.constant 0.327591091 : f32
    %11 = vector.broadcast %cst_7 : f32 to vector<8x128xf32>
    %12 = arith.mulf %11, %10 : vector<8x128xf32>
    %cst_8 = arith.constant 1.000000e+00 : f32
    %13 = vector.broadcast %cst_8 : f32 to vector<8x128xf32>
    %14 = arith.addf %13, %12 : vector<8x128xf32>
    %15 = tpu.reciprocal %14 {approx = true} : vector<8x128xf32> -> vector<8x128xf32>
    %cst_9 = arith.constant 1.06140542 : f32
    %16 = vector.broadcast %cst_9 : f32 to vector<8x128xf32>
    %17 = arith.mulf %16, %15 : vector<8x128xf32>
    %cst_10 = arith.constant -1.45315206 : f32
    %18 = vector.broadcast %cst_10 : f32 to vector<8x128xf32>
    %19 = arith.addf %17, %18 : vector<8x128xf32>
    %20 = arith.mulf %19, %15 : vector<8x128xf32>
    %cst_11 = arith.constant 1.42141378 : f32
    %21 = vector.broadcast %cst_11 : f32 to vector<8x128xf32>
    %22 = arith.addf %20, %21 : vector<8x128xf32>
    %23 = arith.mulf %22, %15 : vector<8x128xf32>
    %cst_12 = arith.constant -0.284496725 : f32
    %24 = vector.broadcast %cst_12 : f32 to vector<8x128xf32>
    %25 = arith.addf %23, %24 : vector<8x128xf32>
    %26 = arith.mulf %25, %15 : vector<8x128xf32>
    %cst_13 = arith.constant 0.254829586 : f32
    %27 = vector.broadcast %cst_13 : f32 to vector<8x128xf32>
    %28 = arith.addf %26, %27 : vector<8x128xf32>
    %29 = arith.mulf %28, %15 : vector<8x128xf32>
    %cst_14 = arith.constant 0.000000e+00 : f32
    %30 = vector.broadcast %cst_14 : f32 to vector<8x128xf32>
    %31 = arith.subf %30, %10 : vector<8x128xf32>
    %32 = arith.mulf %31, %10 : vector<8x128xf32>
    %33 = math.exp %32 : vector<8x128xf32>
    %34 = arith.mulf %29, %33 : vector<8x128xf32>
    %cst_15 = arith.constant 1.000000e+00 : f32
    %35 = vector.broadcast %cst_15 : f32 to vector<8x128xf32>
    %36 = arith.subf %35, %34 : vector<8x128xf32>
    %cst_16 = arith.constant 0.000000e+00 : f32
    %37 = vector.broadcast %cst_16 : f32 to vector<8x128xf32>
    %38 = arith.cmpf oge, %9, %37 : vector<8x128xf32>
    %cst_17 = arith.constant 0.000000e+00 : f32
    %39 = vector.broadcast %cst_17 : f32 to vector<8x128xf32>
    %40 = arith.subf %39, %36 : vector<8x128xf32>
    %41 = arith.select %38, %36, %40 : vector<8x128xi1>, vector<8x128xf32>
    %cst_18 = arith.constant 1.000000e+00 : f32
    %42 = vector.broadcast %cst_18 : f32 to vector<8x128xf32>
    %43 = arith.addf %42, %41 : vector<8x128xf32>
    %44 = arith.mulf %7, %43 : vector<8x128xf32>
    %c0_19 = arith.constant 0 : index
    %c0_20 = arith.constant 0 : index
    %45 = vector.load %arg4[%c0_19, %c0_20] : memref<128x32xf32, #tpu.memory_space<vmem>>, vector<128x32xf32>
    %cst_21 = arith.constant dense<0.000000e+00> : vector<8x32xf32>
    %46 = tpu.matmul %44, %45, %cst_21 {dimension_numbers = #tpu.dot_dimension_numbers<[1], [0], [0], [1], [0, 0, 1, 1], [], []>} : vector<8x128xf32>, vector<128x32xf32>, vector<8x32xf32> -> vector<8x32xf32>
    %c0_22 = arith.constant 0 : index
    %c0_23 = arith.constant 0 : index
    %47 = vector.load %arg5[%c0_22, %c0_23] : memref<1x32xf32, #tpu.memory_space<vmem>>, vector<1x32xf32>
    %48 = vector.broadcast %47 : vector<1x32xf32> to vector<8x32xf32>
    %49 = arith.addf %46, %48 : vector<8x32xf32>
    %c0_24 = arith.constant 0 : index
    %c0_25 = arith.constant 0 : index
    %50 = vector.load %arg6[%c0_24, %c0_25] : memref<8x32xf32, #tpu.memory_space<vmem>>, vector<8x32xf32>
    tpu.vector_store %arg6[%c0_24, %c0_25], %49 {strides = array<i32>} : memref<8x32xf32, #tpu.memory_space<vmem>>, vector<8x32xf32>,
    return
  }
  func.func @transform_0(%arg0: i32) -> (i32, i32) {
    %c0_i32 = arith.constant 0 : i32
    %c0_i32_0 = arith.constant 0 : i32
    return %arg0, %c0_i32 : i32, i32
  }
  func.func @transform_1(%arg0: i32) -> (i32, i32) {
    %c0_i32 = arith.constant 0 : i32
    %c0_i32_0 = arith.constant 0 : i32
    %c0_i32_1 = arith.constant 0 : i32
    return %c0_i32, %c0_i32_0 : i32, i32
  }
  func.func @transform_2(%arg0: i32) -> (i32, i32) {
    %c0_i32 = arith.constant 0 : i32
    %c0_i32_0 = arith.constant 0 : i32
    %c0_i32_1 = arith.constant 0 : i32
    return %c0_i32, %c0_i32_0 : i32, i32
  }
  func.func @transform_3(%arg0: i32) -> (i32, i32) {
    %c0_i32 = arith.constant 0 : i32
    %c0_i32_0 = arith.constant 0 : i32
    %c0_i32_1 = arith.constant 0 : i32
    return %c0_i32, %c0_i32_0 : i32, i32
  }
  func.func @transform_4(%arg0: i32) -> (i32, i32) {
    %c0_i32 = arith.constant 0 : i32
    %c0_i32_0 = arith.constant 0 : i32
    %c0_i32_1 = arith.constant 0 : i32
    return %c0_i32, %c0_i32_0 : i32, i32
  }
  func.func @transform_5(%arg0: i32) -> (i32, i32) {
    %c0_i32 = arith.constant 0 : i32
    %c0_i32_0 = arith.constant 0 : i32
    return %arg0, %c0_i32 : i32, i32
  }
}

</mosaic_0001>

<llo_original>
// kernel: tpu_custom_call.1
$region0: #{tpu_custom_call.1}
  #allocation0 [shape = 'u32[]', space=smem, size = 0x4, offset = 0x4, fixed_abs, tag = 'smem constant byte address 0x4 - core index']
  #allocation1 [shape = 'u32[72,128]{1,0:T(1,128)}', space=vmem, size = 0x9000, scoped, tag = 'internal scratch']
  %s0 = inlined_call_operand.vmem [shape: f32[16,32], index: 0, kind: input, shape index: {}]
  %s1 = inlined_call_operand.vmem [shape: f32[32,128], index: 1, kind: input, shape index: {}]
  %s2 = inlined_call_operand.vmem [shape: f32[1,128], index: 2, kind: input, shape index: {}]
  %s3 = inlined_call_operand.vmem [shape: f32[128,32], index: 3, kind: input, shape index: {}]
  %s4 = inlined_call_operand.vmem [shape: f32[1,32], index: 4, kind: input, shape index: {}]
  %s5 = inlined_call_operand.hbm [shape: f32[16,32], index: 5, kind: output, shape index: {}]
  %s6 = sld [smem:[#allocation0]]
  $region53: #{tpu_custom_call.1} parent=0
    _
  %s8 = ssub.s32 1, %s6
  %s9 = scalar_select 0, %s8, %s6
  $region1: #{tpu_custom_call.1} parent=0
    #allocation2 [shape = 'u8[8192]{0}', space=vmem, size = 0x2000, scoped, tag = 'output window, operand 0']
    #allocation3 [shape = 's32[2]{0}', space=sflag, size = 0x8, scoped, tag = 'scoped memory for tpu_custom_call.1']
    %10 = vsyncpa [#allocation3], 0
    %s11 = scalar_lea.sflag [#allocation3], 1
    %12 = vsyncpa %s11, 0
    loop: start=0, step=1, limit=4
    $region2: #{tpu_custom_call.1} parent=1 // loop_pre_header
      _
    $region3: #{tpu_custom_call.1} parent=1 // loop_header
      %s14 = sphi 0, %s18
      %p15 = scmp.ge.s32.totalorder %s14, 4
      %s24 = sphi 0, %s26
      %s27 = sphi 0, %s24
      %s28 = sphi 0, %s27
      %s44 = sphi 0, %s28
      %s48 = sphi 0, %s48
      %s50 = sphi 0, %s48
      %s51 = sphi 0, %s50
      %s65 = sphi 0, %s51
      %s69 = sphi 0, %s69
      %s71 = sphi 0, %s69
      %s72 = sphi 0, %s71
      %s86 = sphi 0, %s72
      %s90 = sphi 0, %s90
      %s92 = sphi 0, %s90
      %s93 = sphi 0, %s92
      %s107 = sphi 0, %s93
      %s111 = sphi 0, %s111
      %s113 = sphi 0, %s111
      %s114 = sphi 0, %s113
      %s128 = sphi 0, %s114
      %s134 = sphi 0, %s136
      %s137 = sphi 0, %s134
      %s138 = sphi 0, %s137
      %s154 = sphi 0, %s138
    $region4: #{tpu_custom_call.1} parent=1 // loop_header_branch
      %17 = sbr.rel (%p15) target = $region8
    $region5: #{tpu_custom_call.1} parent=1 // loop_body
      %s19 = ssub.s32 %s14, 1
      %s20 = ssub.s32 %s14, 2
      %s21 = sadd.s32 %s14, 1
      %s22 = ssub.s32 %s14, %s21
      %p23 = scmp.eq.s32.totalorder %s22, 0
      %s25 = sadd.s32 %s24, 1
      %s26 = scalar_select %p23, %s24, %s25
      %p29 = pneg %p23
      %p30 = scmp.eq.s32.totalorder %s14, 1
      %p31 = por %p29, %p30
      %p32 = scmp.ne.s32.totalorder %s24, %s27
      %p33 = scmp.eq.s32.totalorder %s14, 0
      %p34 = por %p32, %p33
      %p35 = scmp.ne.s32.totalorder %s24, %s27
      %p36 = scmp.eq.s32.totalorder %s19, 1
      %p37 = por %p35, %p36
      %p38 = scmp.ne.s32.totalorder %s27, %s28
      %p39 = scmp.eq.s32.totalorder %s19, 0
      %p40 = por %p38, %p39
      %p41 = scmp.ne.s32.totalorder %s27, %s28
      %p42 = scmp.eq.s32.totalorder %s20, 1
      %p43 = por %p41, %p42
      %p45 = scmp.ne.s32.totalorder %s28, %s44
      %p46 = scmp.eq.s32.totalorder %s20, 0
      %p47 = por %p45, %p46
      %s49 = sadd.s32 %s48, 1
      %p52 = scmp.eq.s32.totalorder %s14, 1
      %p53 = scmp.ne.s32.totalorder %s48, %s50
      %p54 = scmp.eq.s32.totalorder %s14, 0
      %p55 = por %p53, %p54
      %p56 = scmp.ne.s32.totalorder %s48, %s50
      %p57 = scmp.eq.s32.totalorder %s19, 1
      %p58 = por %p56, %p57
      %p59 = scmp.ne.s32.totalorder %s50, %s51
      %p60 = scmp.eq.s32.totalorder %s19, 0
      %p61 = por %p59, %p60
      %p62 = scmp.ne.s32.totalorder %s50, %s51
      %p63 = scmp.eq.s32.totalorder %s20, 1
      %p64 = por %p62, %p63
      %p66 = scmp.ne.s32.totalorder %s51, %s65
      %p67 = scmp.eq.s32.totalorder %s20, 0
      %p68 = por %p66, %p67
      %s70 = sadd.s32 %s69, 1
      %p73 = scmp.eq.s32.totalorder %s14, 1
      %p74 = scmp.ne.s32.totalorder %s69, %s71
      %p75 = scmp.eq.s32.totalorder %s14, 0
      %p76 = por %p74, %p75
      %p77 = scmp.ne.s32.totalorder %s69, %s71
      %p78 = scmp.eq.s32.totalorder %s19, 1
      %p79 = por %p77, %p78
      %p80 = scmp.ne.s32.totalorder %s71, %s72
      %p81 = scmp.eq.s32.totalorder %s19, 0
      %p82 = por %p80, %p81
      %p83 = scmp.ne.s32.totalorder %s71, %s72
      %p84 = scmp.eq.s32.totalorder %s20, 1
      %p85 = por %p83, %p84
      %p87 = scmp.ne.s32.totalorder %s72, %s86
      %p88 = scmp.eq.s32.totalorder %s20, 0
      %p89 = por %p87, %p88
      %s91 = sadd.s32 %s90, 1
      %p94 = scmp.eq.s32.totalorder %s14, 1
      %p95 = scmp.ne.s32.totalorder %s90, %s92
      %p96 = scmp.eq.s32.totalorder %s14, 0
      %p97 = por %p95, %p96
      %p98 = scmp.ne.s32.totalorder %s90, %s92
      %p99 = scmp.eq.s32.totalorder %s19, 1
      %p100 = por %p98, %p99
      %p101 = scmp.ne.s32.totalorder %s92, %s93
      %p102 = scmp.eq.s32.totalorder %s19, 0
      %p103 = por %p101, %p102
      %p104 = scmp.ne.s32.totalorder %s92, %s93
      %p105 = scmp.eq.s32.totalorder %s20, 1
      %p106 = por %p104, %p105
      %p108 = scmp.ne.s32.totalorder %s93, %s107
      %p109 = scmp.eq.s32.totalorder %s20, 0
      %p110 = por %p108, %p109
      %s112 = sadd.s32 %s111, 1
      %p115 = scmp.eq.s32.totalorder %s14, 1
      %p116 = scmp.ne.s32.totalorder %s111, %s113
      %p117 = scmp.eq.s32.totalorder %s14, 0
      %p118 = por %p116, %p117
      %p119 = scmp.ne.s32.totalorder %s111, %s113
      %p120 = scmp.eq.s32.totalorder %s19, 1
      %p121 = por %p119, %p120
      %p122 = scmp.ne.s32.totalorder %s113, %s114
      %p123 = scmp.eq.s32.totalorder %s19, 0
      %p124 = por %p122, %p123
      %p125 = scmp.ne.s32.totalorder %s113, %s114
      %p126 = scmp.eq.s32.totalorder %s20, 1
      %p127 = por %p125, %p126
      %p129 = scmp.ne.s32.totalorder %s114, %s128
      %p130 = scmp.eq.s32.totalorder %s20, 0
      %p131 = por %p129, %p130
      %s132 = ssub.s32 %s14, %s21
      %p133 = scmp.eq.s32.totalorder %s132, 0
      %s135 = sadd.s32 %s134, 1
      %s136 = scalar_select %p133, %s134, %s135
      %p139 = pneg %p133
      %p140 = scmp.eq.s32.totalorder %s14, 1
      %p141 = por %p139, %p140
      %p142 = scmp.ne.s32.totalorder %s134, %s137
      %p143 = scmp.eq.s32.totalorder %s14, 0
      %p144 = por %p142, %p143
      %p145 = scmp.ne.s32.totalorder %s134, %s137
      %p146 = scmp.eq.s32.totalorder %s19, 1
      %p147 = por %p145, %p146
      %p148 = scmp.ne.s32.totalorder %s137, %s138
      %p149 = scmp.eq.s32.totalorder %s19, 0
      %p150 = por %p148, %p149
      %p151 = scmp.ne.s32.totalorder %s137, %s138
      %p152 = scmp.eq.s32.totalorder %s20, 1
      %p153 = por %p151, %p152
      %p155 = scmp.ne.s32.totalorder %s138, %s154
      %p156 = scmp.eq.s32.totalorder %s20, 0
      %p157 = por %p155, %p156
      %p158 = scmp.le.s32.totalorder 1, %s14
      %p159 = scmp.lt.s32.totalorder %s14, 3
      %p160 = pnand %p158, %p159
      %p161 = pneg %p160
      // Predicated region
      $region9: #{tpu_custom_call.1} parent=5 // pred_check
        _
      $region10: #{tpu_custom_call.1} parent=5 // pred_check_branch
        %163 = sbr.rel (%p160) target = $region12
      $region11: #{tpu_custom_call.1} parent=5 // pred_region
        %s164 = ssub.s32 %s14, 1
        // Predicated region
        $region13: #{tpu_custom_call.1} parent=11 // pred_check
          %p165 = pneg %p61
        $region14: #{tpu_custom_call.1} parent=11 // pred_check_branch
          %167 = sbr.rel (%p165) target = $region16
        $region15: #{tpu_custom_call.1} parent=11 // pred_region
          _
        $region16: #{tpu_custom_call.1} parent=11 // pred_fallthru
          _
        // Predicated region
        $region17: #{tpu_custom_call.1} parent=11 // pred_check
          %p168 = pneg %p82
        $region18: #{tpu_custom_call.1} parent=11 // pred_check_branch
          %170 = sbr.rel (%p168) target = $region20
        $region19: #{tpu_custom_call.1} parent=11 // pred_region
          _
        $region20: #{tpu_custom_call.1} parent=11 // pred_fallthru
          _
        // Predicated region
        $region21: #{tpu_custom_call.1} parent=11 // pred_check
          %p171 = pneg %p103
        $region22: #{tpu_custom_call.1} parent=11 // pred_check_branch
          %173 = sbr.rel (%p171) target = $region24
        $region23: #{tpu_custom_call.1} parent=11 // pred_region
          _
        $region24: #{tpu_custom_call.1} parent=11 // pred_fallthru
          _
        // Predicated region
        $region25: #{tpu_custom_call.1} parent=11 // pred_check
          %p174 = pneg %p124
        $region26: #{tpu_custom_call.1} parent=11 // pred_check_branch
          %176 = sbr.rel (%p174) target = $region28
        $region27: #{tpu_custom_call.1} parent=11 // pred_region
          _
        $region28: #{tpu_custom_call.1} parent=11 // pred_fallthru
          _
      $region12: #{tpu_custom_call.1} parent=5 // pred_fallthru
        _
      %p177 = scmp.lt.s32.totalorder %s14, 2
      // Predicated region
      $region29: #{tpu_custom_call.1} parent=5 // pred_check
        %p178 = pneg %p177
      $region30: #{tpu_custom_call.1} parent=5 // pred_check_branch
        %180 = sbr.rel (%p178) target = $region32
      $region31: #{tpu_custom_call.1} parent=5 // pred_region
        // Predicated region
        $region33: #{tpu_custom_call.1} parent=31 // pred_check
          %p181 = pneg %p34
        $region34: #{tpu_custom_call.1} parent=31 // pred_check_branch
          %183 = sbr.rel (%p181) target = $region36
        $region35: #{tpu_custom_call.1} parent=31 // pred_region
          %p184 = scmp.lt.s32.totalorder %s14, 1
          %s185 = scalar_select %p184, %s14, 1
          %s186 = smul.addr %s185, 8
          %s187 = scalar_lea.vmem %s0, %s186
        $region36: #{tpu_custom_call.1} parent=31 // pred_fallthru
          _
      $region32: #{tpu_custom_call.1} parent=5 // pred_fallthru
        _
      %p188 = scmp.le.s32.totalorder 1, %s14
      %p189 = scmp.lt.s32.totalorder %s14, 3
      %p190 = pnand %p188, %p189
      %p191 = pneg %p190
      // Predicated region
      $region37: #{tpu_custom_call.1} parent=5 // pred_check
        _
      $region38: #{tpu_custom_call.1} parent=5 // pred_check_branch
        %193 = sbr.rel (%p190) target = $region40
      $region39: #{tpu_custom_call.1} parent=5 // pred_region
        %s194 = ssub.s32 %s14, 1
        %p195 = scmp.lt.s32.totalorder %s19, 1
        %s196 = scalar_select %p195, %s19, 1
        %s197 = smul.addr %s196, 8
        %s198 = scalar_lea.vmem %s0, %s197
        %p199 = pneg %p40
        %p200 = pneg %p37
        %p201 = pneg %p61
        %p202 = pneg %p58
        %p203 = pneg %p82
        %p204 = pneg %p79
        %p205 = pneg %p103
        %p206 = pneg %p100
        %p207 = pneg %p124
        %p208 = pneg %p121
        %p209 = pneg %p150
        %p210 = pneg %p147
        %s211 = sand.u32 %s137, 1
        %s212 = scalar_lea.sflag [#allocation3], %s211
        %s213 = sand.u32 %s137, 1
        %s214 = smul.addr %s213, 8
        %s215 = scalar_lea.vmem [#allocation2], %s214
        %p216 = scmp.lt.s32.totalorder %s19, 1
        %s217 = scalar_select %p216, %s19, 1
        %s218 = smul.addr %s217, 8
        %s219 = scalar_lea.vmem %s0, %s218
        %v220 = vld [vmem:[%s219] sm:$0xff]
        %v221 = vld [vmem:[%s1] sm:$0xff]
        %v222 = vld [vmem:[%s1 + $0x8] sm:$0xff]
        %v223 = vld [vmem:[%s1 + $0x10] sm:$0xff]
        %v224 = vld [vmem:[%s1 + $0x18] sm:$0xff]
        %v225 = vld [vmem:[%s2] sm:$0x1]
        %v227 = vperm.slane %v225, 0
        %vm229 = vcmask 261120
        %v231 = vsel %vm229, %v220, 0
        %233 = vmatpush.msra.mxu0 0.0
        %234 = vmatpush.msra.mxu0 0.0
        %235 = vmatpush.msra.mxu0 0.0
        %236 = vmatpush.msra.mxu0 0.0
        %237 = vmatpush.msra.mxu0 0.0
        %238 = vmatpush.msra.mxu0 0.0
        %239 = vmatpush.msra.mxu0 0.0
        %240 = vmatpush.msra.mxu0 0.0
        %241 = vmatpush.msra.mxu0 0.0
        %242 = vmatpush.msra.mxu0 0.0
        %243 = vmatpush.msra.mxu0 0.0
        %244 = vmatpush.msra.mxu0 0.0
        %245 = vmatpush.msra.mxu0 %v224
        %246 = vmatpush.msra.mxu0 %v223
        %247 = vmatpush.msra.mxu0 %v222
        %248 = vmatpush.msra.mxu0 %v221
        %249 = vmatmul.f32.gmra.mxu0 %v231
        %v250 = vpop.f32.mrf.mxu0
        %v251 = vadd.f32 %v227, %v250
        %252 = vdwg.mxu0
        %v253 = vmul.f32 %v251, 0.5
        %v254 = vmul.f32 %v251, 0.70710677
        %v255 = vand.u32 2147483647, %v254
        %v256 = vmul.f32 %v255, 0.3275911
        %v257 = vadd.f32 %v256, 1.0
        %v258 = vrcp.pop %v257
        %v259 = vmul.f32 %v258, 1.0614054
        %v260 = vadd.f32 %v259, -1.4531521
        %v261 = vmul.f32 %v260, %v258
        %v262 = vadd.f32 %v261, 1.4214138
        %v263 = vmul.f32 %v262, %v258
        %v264 = vadd.f32 %v263, -0.28449672
        %v265 = vmul.f32 %v264, %v258
        %v266 = vadd.f32 %v265, 0.2548296
        %v267 = vmul.f32 %v266, %v258
        %v268 = vsub.f32 0.0, %v255
        %v269 = vmul.f32 %v268, %v255
        %v270 = vmul.f32 %v269, 1.442695
        %v271 = vpow.pop %v270
        %v272 = vmul.f32 %v267, %v271
        %v273 = vsub.f32 1.0, %v272
        %vm274 = vcmp.ge.f32.partialorder %v254, 0.0
        %v275 = vsub.f32 0.0, %v273
        %v276 = vsel %vm274, %v273, %v275
        %v277 = vadd.f32 %v276, 1.0
        %v278 = vmul.f32 %v253, %v277
        %v279 = vld [vmem:[%s3] sm:$0xff]
        %v280 = vld [vmem:[%s3 + $0x8] sm:$0xff]
        %v281 = vld [vmem:[%s3 + $0x10] sm:$0xff]
        %v282 = vld [vmem:[%s3 + $0x18] sm:$0xff]
        %v283 = vld [vmem:[%s3 + $0x20] sm:$0xff]
        %v284 = vld [vmem:[%s3 + $0x28] sm:$0xff]
        %v285 = vld [vmem:[%s3 + $0x30] sm:$0xff]
        %v286 = vld [vmem:[%s3 + $0x38] sm:$0xff]
        %v287 = vld [vmem:[%s3 + $0x40] sm:$0xff]
        %v288 = vld [vmem:[%s3 + $0x48] sm:$0xff]
        %v289 = vld [vmem:[%s3 + $0x50] sm:$0xff]
        %v290 = vld [vmem:[%s3 + $0x58] sm:$0xff]
        %v291 = vld [vmem:[%s3 + $0x60] sm:$0xff]
        %v292 = vld [vmem:[%s3 + $0x68] sm:$0xff]
        %v293 = vld [vmem:[%s3 + $0x70] sm:$0xff]
        %v294 = vld [vmem:[%s3 + $0x78] sm:$0xff]
        %v295 = vld [vmem:[%s4] sm:$0x1]
        %v297 = vperm.slane %v295, 0
        %299 = vmatpush.msra.mxu0 %v294
        %300 = vmatpush.msra.mxu0 %v293
        %301 = vmatpush.msra.mxu0 %v292
        %302 = vmatpush.msra.mxu0 %v291
        %303 = vmatpush.msra.mxu0 %v290
        %304 = vmatpush.msra.mxu0 %v289
        %305 = vmatpush.msra.mxu0 %v288
        %306 = vmatpush.msra.mxu0 %v287
        %307 = vmatpush.msra.mxu0 %v286
        %308 = vmatpush.msra.mxu0 %v285
        %309 = vmatpush.msra.mxu0 %v284
        %310 = vmatpush.msra.mxu0 %v283
        %311 = vmatpush.msra.mxu0 %v282
        %312 = vmatpush.msra.mxu0 %v281
        %313 = vmatpush.msra.mxu0 %v280
        %314 = vmatpush.msra.mxu0 %v279
        %315 = vmatmul.f32.gmra.mxu0 %v278
        %v316 = vpop.f32.mrf.mxu0
        %v317 = vadd.f32 %v297, %v316
        %318 = vdwg.mxu0
        %319 = vst.msk [vmem:[%s215] sm:$0xff] %vm229, %v317
        %s320 = sand.u32 %s137, 1
        %s321 = scalar_lea.sflag [#allocation3], %s320
        %s322 = sand.u32 %s137, 1
        %s323 = smul.addr %s322, 8
        %s324 = scalar_lea.vmem [#allocation2], %s323
        // Predicated region
        $region41: #{tpu_custom_call.1} parent=39 // pred_check
          %p325 = pneg %p147
        $region42: #{tpu_custom_call.1} parent=39 // pred_check_branch
          %327 = sbr.rel (%p325) target = $region44
        $region43: #{tpu_custom_call.1} parent=39 // pred_region
          %329 = vsyncadd %s321, 0
          %s330 = smul.addr %s19, 8
          %s331 = scalar_lea.hbm %s5, %s330
          %s333 = sshll.u32 %s324, 4
          %s334 = int_to_ptr.vmem [resolvable:$true] %s333
          %s335 = sshll.u32 %s331, 4
          %s336 = int_to_ptr.hbm [resolvable:$true] %s335
          %338 = dma.vmem_to_hbm [thread:$0]  %s334, 128, %s336, %s321
        $region44: #{tpu_custom_call.1} parent=39 // pred_fallthru
          _
      $region40: #{tpu_custom_call.1} parent=5 // pred_fallthru
        _
      %p339 = scmp.le.s32.totalorder 2, %s14
      // Predicated region
      $region45: #{tpu_custom_call.1} parent=5 // pred_check
        %p340 = pneg %p339
      $region46: #{tpu_custom_call.1} parent=5 // pred_check_branch
        %342 = sbr.rel (%p340) target = $region48
      $region47: #{tpu_custom_call.1} parent=5 // pred_region
        %s343 = ssub.s32 %s14, 2
        // Predicated region
        $region49: #{tpu_custom_call.1} parent=47 // pred_check
          %p344 = pneg %p153
        $region50: #{tpu_custom_call.1} parent=47 // pred_check_branch
          %346 = sbr.rel (%p344) target = $region52
        $region51: #{tpu_custom_call.1} parent=47 // pred_region
          %s347 = sand.u32 %s138, 1
          %s348 = scalar_lea.sflag [#allocation3], %s347
          %s349 = sand.u32 %s138, 1
          %s350 = smul.addr %s349, 8
          %s351 = scalar_lea.vmem [#allocation2], %s350
          %353 = dma.done %s348, 128
        $region52: #{tpu_custom_call.1} parent=47 // pred_fallthru
          _
      $region48: #{tpu_custom_call.1} parent=5 // pred_fallthru
        _
    $region6: #{tpu_custom_call.1} parent=1 // loop_footer
      %s18 = sadd.s32 1, %s14
    $region7: #{tpu_custom_call.1} parent=1 // loop_footer_branch
      %13 = sbr.rel target = $region3
    $region8: #{tpu_custom_call.1} parent=1 // loop_exit
      _
    %354 = vsyncpa [#allocation3], 1
    %s355 = scalar_lea.sflag [#allocation3], 1
    %356 = vsyncpa %s355, 1

</llo_original>
